<compile_context>
chip_gen: v5e
topology: v5e:2x2
jax: 0.10.0
libtpu: 0.0.40
codegen_flags: <defaults>
</compile_context>

<pallas_src>
import jax
import jax.numpy as jnp
from jax.experimental import pallas as pl
from jax.experimental.pallas import tpu as pltpu

LANE = 128  # TPU vreg lane width


def _round_up(n, m):
    return ((n + m - 1) // m) * m


def mlp_kernel(x_ref, w1_ref, b1_ref, w2_ref, b2_ref, o_ref):
    # fc1: canonical (M,K)x(K,N) matmul on the MXU, f32 accumulation.
    h = jnp.dot(x_ref[...], w1_ref[...], preferred_element_type=jnp.float32)
    # Bias + ReLU epilogue kept in f32 (required on v5e, numerically safer everywhere).
    h = jnp.maximum(h + b1_ref[...], 0.0)
    # fc2: cast activations back to the weight compute dtype (no-op for f32 weights).
    y = jnp.dot(h.astype(w2_ref.dtype), w2_ref[...],
                preferred_element_type=jnp.float32)
    o_ref[...] = (y + b2_ref[...]).astype(o_ref.dtype)


def prepare_params(w1, b1, w2, b2, *, compute_dtype=jnp.float32):
    """One-time parameter prep (NOT on the per-call critical path).

    * Transposes the PyTorch (H, IN)/(OUT, H) weights to (IN, Hp)/(Hp, OUT_pad)
      so both kernel dots are canonical MXU matmuls.
    * Zero-pads the hidden dim to a multiple of 128 lanes and the output dim to
      a multiple of 128 lanes (lane-dense intermediates and unmasked output store).
    * Optionally casts weights to bf16; biases stay f32 for the f32 epilogue.
    """
    H, IN = w1.shape
    OUT = w2.shape[0]
    h_pad = _round_up(H, LANE)
    out_pad = _round_up(OUT, LANE)

    w1_t = jnp.zeros((IN, h_pad), compute_dtype).at[:, :H].set(
        w1.T.astype(compute_dtype))                       # (IN, Hp)
    b1_p = jnp.zeros((1, h_pad), jnp.float32).at[:, :H].set(
        b1.astype(jnp.float32))                           # (1, Hp)
    w2_t = jnp.zeros((h_pad, out_pad), compute_dtype).at[:H, :OUT].set(
        w2.T.astype(compute_dtype))                       # (Hp, OUT_pad)
    b2_p = jnp.zeros((1, out_pad), jnp.float32).at[:, :OUT].set(
        b2.astype(jnp.float32))                           # (1, OUT_pad)

    return {"w1": w1_t, "b1": b1_p, "w2": w2_t, "b2": b2_p,
            "out_features": OUT}


def _pick_batch_block(B):
    """Largest batch tile (multiple of 128 rows) that evenly divides B."""
    for bm in (512, 256, 128):
        if B % bm == 0:
            return bm
    return None


def basic_linear_model(x, params):
    """Forward pass of BasicLinearModel: relu(x @ W1^T + b1) @ W2^T + b2."""
    B, IN = x.shape
    out_pad = params["w2"].shape[1]
    compute_dtype = params["w1"].dtype
    x_c = x.astype(compute_dtype)
    out_shape = jax.ShapeDtypeStruct((B, out_pad), jnp.float32)

    bm = _pick_batch_block(B)
    if bm is None:
        # Tiny-shape path: no grid, whole arrays live in VMEM (single DMA each).
        vmem = pl.BlockSpec(memory_space=pltpu.MemorySpace.VMEM)
        y_pad = pl.pallas_call(
            mlp_kernel,
            out_shape=out_shape,
            in_specs=[vmem] * 5,
            out_specs=vmem,
        )(x_c, params["w1"], params["b1"], params["w2"], params["b2"])
    else:
        # Batch-tiled path: grid over B, weights resident (grid-invariant blocks),
        # batch axis marked "parallel" so v7x shards it across both TensorCores.
        y_pad = pl.pallas_call(
            mlp_kernel,
            out_shape=out_shape,
            grid=(B // bm,),
            in_specs=[
                pl.BlockSpec((bm, IN), lambda i: (i, 0)),
                pl.BlockSpec(params["w1"].shape, lambda i: (0, 0)),
                pl.BlockSpec(params["b1"].shape, lambda i: (0, 0)),
                pl.BlockSpec(params["w2"].shape, lambda i: (0, 0)),
                pl.BlockSpec(params["b2"].shape, lambda i: (0, 0)),
            ],
            out_specs=pl.BlockSpec((bm, out_pad), lambda i: (i, 0)),
            compiler_params=pltpu.CompilerParams(
                dimension_semantics=("parallel",)),
        )(x_c, params["w1"], params["b1"], params["w2"], params["b2"])

    # Padded columns are exactly zero (zero weights + zero bias); drop them.
    # TODO(synk): have downstream consumers accept the padded (B, 128) slab to
    # avoid this slice once shapes grow.
    return y_pad[:, : params["out_features"]]


if __name__ == "__main__":
    # Small shapes consistent with the module: batch=8, input=32, hidden=64, output=16.
    B, IN, H, OUT = 8, 32, 64, 16

    key = jax.random.PRNGKey(0)
    kx, kw1, kb1, kw2, kb2, kxb = jax.random.split(key, 6)

    x = jax.random.normal(kx, (B, IN), dtype=jnp.float32)

    # Deterministic parameter init (PyTorch-style uniform bounds, synthetic values).
    bound1 = 1.0 / (IN ** 0.5)
    w1 = jax.random.uniform(kw1, (H, IN), jnp.float32, -bound1, bound1)
    b1 = jax.random.uniform(kb1, (H,), jnp.float32, -bound1, bound1)
    bound2 = 1.0 / (H ** 0.5)
    w2 = jax.random.uniform(kw2, (OUT, H), jnp.float32, -bound2, bound2)
    b2 = jax.random.uniform(kb2, (OUT,), jnp.float32, -bound2, bound2)

    # Plain-JAX reference (same semantics as the PyTorch forward).
    ref_fn = lambda xx: jnp.maximum(xx @ w1.T + b1, 0.0) @ w2.T + b2

    # 1) Tiny-shape case: f32, no-grid whole-array-VMEM path (tight check).
    params_f32 = prepare_params(w1, b1, w2, b2, compute_dtype=jnp.float32)
    out = basic_linear_model(x, params_f32)
    jax.block_until_ready(out)
    assert out.shape == (B, OUT)
    assert jnp.allclose(out, ref_fn(x), atol=1e-5, rtol=1e-5)

    # 2) Batch-scaled case: bf16 weights/activations (f32 accumulate),
    #    batch-tiled grid with a "parallel" batch axis (2-TC v7x sharding).
    B_big = 1024
    xb = jax.random.normal(kxb, (B_big, IN), dtype=jnp.float32)
    params_bf16 = prepare_params(w1, b1, w2, b2, compute_dtype=jnp.bfloat16)
    out_big = basic_linear_model(xb, params_bf16)
    jax.block_until_ready(out_big)
    assert out_big.shape == (B_big, OUT)
    assert jnp.allclose(out_big, ref_fn(xb), atol=3e-2, rtol=3e-2)

    print("KERNEL_OK")
</pallas_src>

<mosaic_0001>
module attributes {stable_mosaic.version = 11 : i64} {
  func.func @mlp_kernel(%arg0: memref<8x32xf32, #tpu.memory_space<vmem>>, %arg1: memref<32x128xf32, #tpu.memory_space<vmem>>, %arg2: memref<1x128xf32, #tpu.memory_space<vmem>>, %arg3: memref<128x128xf32, #tpu.memory_space<vmem>>, %arg4: memref<1x128xf32, #tpu.memory_space<vmem>>, %arg5: memref<8x128xf32, #tpu.memory_space<vmem>>) attributes {dimension_semantics = [], scalar_prefetch = 0 : i64, scratch_operands = 0 : i64, tpu.core_type = #tpu.core_type<tc>} {
    %c0 = arith.constant 0 : index
    %c0_0 = arith.constant 0 : index
    %0 = vector.load %arg0[%c0, %c0_0] : memref<8x32xf32, #tpu.memory_space<vmem>>, vector<8x32xf32>
    %c0_1 = arith.constant 0 : index
    %c0_2 = arith.constant 0 : index
    %1 = vector.load %arg1[%c0_1, %c0_2] : memref<32x128xf32, #tpu.memory_space<vmem>>, vector<32x128xf32>
    %cst = arith.constant dense<0.000000e+00> : vector<8x128xf32>
    %2 = tpu.matmul %0, %1, %cst {dimension_numbers = #tpu.dot_dimension_numbers<[1], [0], [0], [1], [0, 0, 1, 1], [], []>} : vector<8x32xf32>, vector<32x128xf32>, vector<8x128xf32> -> vector<8x128xf32>
    %c0_3 = arith.constant 0 : index
    %c0_4 = arith.constant 0 : index
    %3 = vector.load %arg2[%c0_3, %c0_4] : memref<1x128xf32, #tpu.memory_space<vmem>>, vector<1x128xf32>
    %4 = vector.broadcast %3 : vector<1x128xf32> to vector<8x128xf32>
    %5 = arith.addf %2, %4 : vector<8x128xf32>
    %cst_5 = arith.constant 0.000000e+00 : f32
    %6 = vector.broadcast %cst_5 : f32 to vector<8x128xf32>
    %7 = arith.maximumf %5, %6 : vector<8x128xf32>
    %c0_6 = arith.constant 0 : index
    %c0_7 = arith.constant 0 : index
    %8 = vector.load %arg3[%c0_6, %c0_7] : memref<128x128xf32, #tpu.memory_space<vmem>>, vector<128x128xf32>
    %cst_8 = arith.constant dense<0.000000e+00> : vector<8x128xf32>
    %9 = tpu.matmul %7, %8, %cst_8 {dimension_numbers = #tpu.dot_dimension_numbers<[1], [0], [0], [1], [0, 0, 1, 1], [], []>} : vector<8x128xf32>, vector<128x128xf32>, vector<8x128xf32> -> vector<8x128xf32>
    %c0_9 = arith.constant 0 : index
    %c0_10 = arith.constant 0 : index
    %10 = vector.load %arg4[%c0_9, %c0_10] : memref<1x128xf32, #tpu.memory_space<vmem>>, vector<1x128xf32>
    %11 = vector.broadcast %10 : vector<1x128xf32> to vector<8x128xf32>
    %12 = arith.addf %9, %11 : vector<8x128xf32>
    %c0_11 = arith.constant 0 : index
    %c0_12 = arith.constant 0 : index
    %13 = vector.load %arg5[%c0_11, %c0_12] : memref<8x128xf32, #tpu.memory_space<vmem>>, vector<8x128xf32>
    tpu.vector_store %arg5[%c0_11, %c0_12], %12 {strides = array<i32>} : memref<8x128xf32, #tpu.memory_space<vmem>>, vector<8x128xf32>,
    return
  }
}

</mosaic_0001>

<llo_original>
// kernel: tpu_custom_call.1
$region0: #{tpu_custom_call.1}
  #allocation0 [shape = 'u32[]', space=smem, size = 0x4, offset = 0x4, fixed_abs, tag = 'smem constant byte address 0x4 - core index']
  #allocation1 [shape = 'u32[72,128]{1,0:T(1,128)}', space=vmem, size = 0x9000, scoped, tag = 'internal scratch']
  %s0 = inlined_call_operand.hbm [shape: f32[8,32], index: 0, kind: input, shape index: {}]
  %s1 = inlined_call_operand.hbm [shape: f32[32,128], index: 1, kind: input, shape index: {}]
  %s2 = inlined_call_operand.vmem [shape: f32[1,128], index: 2, kind: input, shape index: {}]
  %s3 = inlined_call_operand.hbm [shape: f32[128,128], index: 3, kind: input, shape index: {}]
  %s4 = inlined_call_operand.vmem [shape: f32[1,128], index: 4, kind: input, shape index: {}]
  %s5 = inlined_call_operand.hbm [shape: f32[8,128], index: 5, kind: output, shape index: {}]
  %s6 = sld [smem:[#allocation0]]
  $region42: #{tpu_custom_call.1} parent=0
    _
  %s8 = ssub.s32 1, %s6
  %s9 = scalar_select 0, %s8, %s6
  $region1: #{tpu_custom_call.1} parent=0
    #allocation2 [shape = 'u8[4096]{0}', space=vmem, size = 0x1000, scoped, tag = 'input window, operand 0, single buffered']
    #allocation3 [shape = 's32[1]{0}', space=sflag, size = 0x4, scoped, tag = 'scoped memory for tpu_custom_call.1']
    #allocation4 [shape = 's32[1]{0}', space=sflag, size = 0x4, scoped, tag = 'scoped memory for tpu_custom_call.1']
    #allocation5 [shape = 'u8[16384]{0}', space=vmem, size = 0x4000, scoped, tag = 'input window, operand 1, single buffered']
    #allocation6 [shape = 's32[1]{0}', space=sflag, size = 0x4, scoped, tag = 'scoped memory for tpu_custom_call.1']
    #allocation7 [shape = 'u8[65536]{0}', space=vmem, size = 0x10000, scoped, tag = 'input window, operand 3, single buffered']
    #allocation8 [shape = 'u8[4096]{0}', space=vmem, size = 0x1000, scoped, tag = 'output window, operand 0, single buffered']
    %10 = vsyncpa [#allocation3], 0
    %11 = vsyncpa [#allocation6], 0
    %12 = vsyncpa [#allocation4], 0
    // Predicated region
    $region2: #{tpu_custom_call.1} parent=1 // pred_check
      _
    $region3: #{tpu_custom_call.1} parent=1 // pred_check_branch
      %14 = sbr.rel (0) target = $region5
    $region4: #{tpu_custom_call.1} parent=1 // pred_region
      %16 = vsyncadd [#allocation3], 0
      %s18 = sshll.u32 %s0, 4
      %s19 = int_to_ptr.hbm [resolvable:$true] %s18
      %s20 = sshll.u32 [#allocation2], 4
      %s21 = int_to_ptr.vmem [resolvable:$true] %s20
      %23 = dma.hbm_to_vmem [thread:$0]  %s19, 128, %s21, [#allocation3]
    $region5: #{tpu_custom_call.1} parent=1 // pred_fallthru
      _
    // Predicated region
    $region6: #{tpu_custom_call.1} parent=1 // pred_check
      _
    $region7: #{tpu_custom_call.1} parent=1 // pred_check_branch
      %25 = sbr.rel (0) target = $region9
    $region8: #{tpu_custom_call.1} parent=1 // pred_region
      %27 = vsyncadd [#allocation6], 0
      %s28 = sshll.u32 %s1, 4
      %s29 = int_to_ptr.hbm [resolvable:$true] %s28
      %s30 = sshll.u32 [#allocation5], 4
      %s31 = int_to_ptr.vmem [resolvable:$true] %s30
      %36 = dma.hbm_to_vmem [thread:$0]  %s29, 512, %s31, [#allocation6], 128, 128, 8
    $region9: #{tpu_custom_call.1} parent=1 // pred_fallthru
      _
    // Predicated region
    $region10: #{tpu_custom_call.1} parent=1 // pred_check
      _
    $region11: #{tpu_custom_call.1} parent=1 // pred_check_branch
      %38 = sbr.rel (0) target = $region13
    $region12: #{tpu_custom_call.1} parent=1 // pred_region
      _
    $region13: #{tpu_custom_call.1} parent=1 // pred_fallthru
      _
    // Predicated region
    $region14: #{tpu_custom_call.1} parent=1 // pred_check
      _
    $region15: #{tpu_custom_call.1} parent=1 // pred_check_branch
      %40 = sbr.rel (0) target = $region17
    $region16: #{tpu_custom_call.1} parent=1 // pred_region
      %42 = vsyncadd [#allocation6], 0
      %s43 = sshll.u32 %s3, 4
      %s44 = int_to_ptr.hbm [resolvable:$true] %s43
      %s45 = sshll.u32 [#allocation7], 4
      %s46 = int_to_ptr.vmem [resolvable:$true] %s45
      %51 = dma.hbm_to_vmem [thread:$0]  %s44, 2048, %s46, [#allocation6], 128, 128, 8
    $region17: #{tpu_custom_call.1} parent=1 // pred_fallthru
      _
    // Predicated region
    $region18: #{tpu_custom_call.1} parent=1 // pred_check
      _
    $region19: #{tpu_custom_call.1} parent=1 // pred_check_branch
      %53 = sbr.rel (0) target = $region21
    $region20: #{tpu_custom_call.1} parent=1 // pred_region
      _
    $region21: #{tpu_custom_call.1} parent=1 // pred_fallthru
      _
    // Predicated region
    $region22: #{tpu_custom_call.1} parent=1 // pred_check
      _
    $region23: #{tpu_custom_call.1} parent=1 // pred_check_branch
      %55 = sbr.rel (0) target = $region25
    $region24: #{tpu_custom_call.1} parent=1 // pred_region
      %57 = dma.done [#allocation3], 128
    $region25: #{tpu_custom_call.1} parent=1 // pred_fallthru
      _
    // Predicated region
    $region26: #{tpu_custom_call.1} parent=1 // pred_check
      _
    $region27: #{tpu_custom_call.1} parent=1 // pred_check_branch
      %59 = sbr.rel (0) target = $region29
    $region28: #{tpu_custom_call.1} parent=1 // pred_region
      %61 = dma.done [#allocation6], 512
    $region29: #{tpu_custom_call.1} parent=1 // pred_fallthru
      _
    // Predicated region
    $region30: #{tpu_custom_call.1} parent=1 // pred_check
      _
    $region31: #{tpu_custom_call.1} parent=1 // pred_check_branch
      %63 = sbr.rel (0) target = $region33
    $region32: #{tpu_custom_call.1} parent=1 // pred_region
      %65 = dma.done [#allocation6], 2048
    $region33: #{tpu_custom_call.1} parent=1 // pred_fallthru
      _
    %v66 = vld [vmem:[#allocation2] sm:$0xff]
    %v67 = vld [vmem:[#allocation5] sm:$0xff]
    %v68 = vld [vmem:[#allocation5 + $0x8] sm:$0xff]
    %v69 = vld [vmem:[#allocation5 + $0x10] sm:$0xff]
    %v70 = vld [vmem:[#allocation5 + $0x18] sm:$0xff]
    %v71 = vld [vmem:[%s2] sm:$0x1]
    %v73 = vperm.slane %v71, 0
    %vm75 = vcmask 261120
    %v77 = vsel %vm75, %v66, 0
    %79 = vmatpush.msra.mxu0 0.0
    %80 = vmatpush.msra.mxu0 0.0
    %81 = vmatpush.msra.mxu0 0.0
    %82 = vmatpush.msra.mxu0 0.0
    %83 = vmatpush.msra.mxu0 0.0
    %84 = vmatpush.msra.mxu0 0.0
    %85 = vmatpush.msra.mxu0 0.0
    %86 = vmatpush.msra.mxu0 0.0
    %87 = vmatpush.msra.mxu0 0.0
    %88 = vmatpush.msra.mxu0 0.0
    %89 = vmatpush.msra.mxu0 0.0
    %90 = vmatpush.msra.mxu0 0.0
    %91 = vmatpush.msra.mxu0 %v70
    %92 = vmatpush.msra.mxu0 %v69
    %93 = vmatpush.msra.mxu0 %v68
    %94 = vmatpush.msra.mxu0 %v67
    %95 = vmatmul.f32.gmra.mxu0 %v77
    %v96 = vpop.f32.mrf.mxu0
    %v97 = vadd.f32 %v73, %v96
    %98 = vdwg.mxu0
    %v99 = vmax.f32 %v97, 0.0
    %v100 = vld [vmem:[#allocation7] sm:$0xff]
    %v101 = vld [vmem:[#allocation7 + $0x8] sm:$0xff]
    %v102 = vld [vmem:[#allocation7 + $0x10] sm:$0xff]
    %v103 = vld [vmem:[#allocation7 + $0x18] sm:$0xff]
    %v104 = vld [vmem:[#allocation7 + $0x20] sm:$0xff]
    %v105 = vld [vmem:[#allocation7 + $0x28] sm:$0xff]
    %v106 = vld [vmem:[#allocation7 + $0x30] sm:$0xff]
    %v107 = vld [vmem:[#allocation7 + $0x38] sm:$0xff]
    %v108 = vld [vmem:[#allocation7 + $0x40] sm:$0xff]
    %v109 = vld [vmem:[#allocation7 + $0x48] sm:$0xff]
    %v110 = vld [vmem:[#allocation7 + $0x50] sm:$0xff]
    %v111 = vld [vmem:[#allocation7 + $0x58] sm:$0xff]
    %v112 = vld [vmem:[#allocation7 + $0x60] sm:$0xff]
    %v113 = vld [vmem:[#allocation7 + $0x68] sm:$0xff]
    %v114 = vld [vmem:[#allocation7 + $0x70] sm:$0xff]
    %v115 = vld [vmem:[#allocation7 + $0x78] sm:$0xff]
    %v116 = vld [vmem:[%s4] sm:$0x1]
    %v118 = vperm.slane %v116, 0
    %120 = vmatpush.msra.mxu0 %v115
    %121 = vmatpush.msra.mxu0 %v114
    %122 = vmatpush.msra.mxu0 %v113
    %123 = vmatpush.msra.mxu0 %v112
    %124 = vmatpush.msra.mxu0 %v111
    %125 = vmatpush.msra.mxu0 %v110
    %126 = vmatpush.msra.mxu0 %v109
    %127 = vmatpush.msra.mxu0 %v108
    %128 = vmatpush.msra.mxu0 %v107
    %129 = vmatpush.msra.mxu0 %v106
    %130 = vmatpush.msra.mxu0 %v105
    %131 = vmatpush.msra.mxu0 %v104
    %132 = vmatpush.msra.mxu0 %v103
    %133 = vmatpush.msra.mxu0 %v102
    %134 = vmatpush.msra.mxu0 %v101
    %135 = vmatpush.msra.mxu0 %v100
    %136 = vmatmul.f32.gmra.mxu0 %v99
    %v137 = vpop.f32.mrf.mxu0
    %v138 = vadd.f32 %v118, %v137
    %139 = vdwg.mxu0
    %140 = vst [vmem:[#allocation8] sm:$0xff] %v138
    // Predicated region
    $region34: #{tpu_custom_call.1} parent=1 // pred_check
      _
    $region35: #{tpu_custom_call.1} parent=1 // pred_check_branch
      %142 = sbr.rel (0) target = $region37
    $region36: #{tpu_custom_call.1} parent=1 // pred_region
      %144 = vsyncadd [#allocation4], 0
      %s146 = sshll.u32 [#allocation8], 4
      %s147 = int_to_ptr.vmem [resolvable:$true] %s146
      %s148 = sshll.u32 %s5, 4
      %s149 = int_to_ptr.hbm [resolvable:$true] %s148
      %151 = dma.vmem_to_hbm [thread:$0]  %s147, 128, %s149, [#allocation4]
    $region37: #{tpu_custom_call.1} parent=1 // pred_fallthru
      _
    // Predicated region
    $region38: #{tpu_custom_call.1} parent=1 // pred_check
      _
    $region39: #{tpu_custom_call.1} parent=1 // pred_check_branch
      %153 = sbr.rel (0) target = $region41
    $region40: #{tpu_custom_call.1} parent=1 // pred_region
      %155 = dma.done [#allocation4], 128
    $region41: #{tpu_custom_call.1} parent=1 // pred_fallthru
      _
    %156 = vsyncpa [#allocation3], 1
    %157 = vsyncpa [#allocation6], 1
    %158 = vsyncpa [#allocation4], 1

</llo_original>
